<compile_context>
chip_gen: v7x
topology: tpu7x:2x2x1
jax: 0.10.0
libtpu: 0.0.40
codegen_flags: <defaults>
</compile_context>

<pallas_src>
import functools

import jax
import jax.numpy as jnp
from jax.experimental import pallas as pl
from jax.experimental.pallas import tpu as pltpu


_TILE_I_CANDIDATES = (1024, 512, 256, 128, 64, 32, 16, 8)   # sublane-aligned
_TILE_J_CANDIDATES = (2048, 1024, 512, 256, 128)            # lane-aligned


def _round_up(x, m):
    return ((x + m - 1) // m) * m


def _pick_tile(padded, candidates, max_waste=0.125):
    """Largest tile from `candidates` (descending) keeping padding waste small."""
    for c in candidates:
        if c > padded:
            continue
        waste = (_round_up(padded, c) - padded) / padded
        if waste <= max_waste:
            return c
    return candidates[-1]


def _soft_rank_loss_kernel(p_col_ref, p_row_ref, t_col_ref, t_row_ref, out_ref,
                           *, alpha):
    j = pl.program_id(1)

    # Output block is resident across the whole j (reduction) axis.
    @pl.when(j == 0)
    def _():
        out_ref[...] = jnp.zeros_like(out_ref)

    p_i = p_col_ref[...] * alpha                  # (TILE_I, 1)
    p_j = p_row_ref[...] * alpha                  # (1, TILE_J)
    x = p_i - p_j                                 # (TILE_I, TILE_J): alpha*(p[i]-p[j])

    # mask[i, j] = true[j] <= true[i]  -> excluded pair (contributes exactly 0).
    mask = t_row_ref[...] <= t_col_ref[...]       # (TILE_I, TILE_J) via broadcast

    # Stable softplus(x) == -log(sigmoid(-x)); only exp + log hit the EUP.
    # TODO(synk): optional EUP-halving via precomputed exp(+-alpha*p) is only
    # safe when |alpha*p| << 80; keeping the range-safe form here.
    sp = jnp.maximum(x, 0.0) + jnp.log(1.0 + jnp.exp(-jnp.abs(x)))
    contrib = jnp.where(mask, 0.0, sp)

    # Sublane-only reduction -> (1, TILE_J) lane vector; lane-dense accumulate.
    # The cross-lane sum is deferred to the wrapper (one tiny op per call).
    out_ref[...] += jnp.sum(contrib, axis=0, keepdims=True)[None]


def soft_rank_loss(predict_scores, true_scores, alpha, *, tile_i=512, tile_j=2048):
    """Pallas TPU implementation of SoftRankLoss.forward."""
    assert predict_scores.ndim == 1 and true_scores.ndim == 1
    b = predict_scores.shape[0]

    # Matches the PyTorch module exactly (b <= 2 is degenerate there as well).
    num_not_mask_count = b ** 2 / 2 - b

    p = predict_scores.astype(jnp.float32)
    t = true_scores.astype(jnp.float32)

    # Padding-aware tile selection (pad rows to 8, cols to 128 only).
    pad_i = _round_up(b, 8)
    pad_j = _round_up(b, 128)
    tile_i = max(8, _round_up(min(tile_i, _pick_tile(pad_i, _TILE_I_CANDIDATES)), 8))
    tile_j = max(128, _round_up(min(tile_j, _pick_tile(pad_j, _TILE_J_CANDIDATES)), 128))

    # Megacore (v7x): make sure the "parallel" i axis has >= 2 tiles when
    # possible so both TensorCores get work; costs one extra grid step on
    # single-TC chips, which is negligible.
    if _round_up(pad_i, tile_i) // tile_i < 2 and pad_i >= 16:
        tile_i = _round_up((pad_i + 1) // 2, 8)

    bp_i = _round_up(pad_i, tile_i)
    bp_j = _round_up(pad_j, tile_j)
    ni = bp_i // tile_i
    nj = bp_j // tile_j

    # Column (i) and row (j) views, padded so every padded pair is masked out:
    #   padded rows get true = +inf  (anything <= +inf -> masked)
    #   padded cols get true = -inf  (-inf <= anything -> masked)
    p_col = jnp.zeros((bp_i,), jnp.float32).at[:b].set(p).reshape(bp_i, 1)
    p_row = jnp.zeros((bp_j,), jnp.float32).at[:b].set(p).reshape(1, bp_j)
    t_col = jnp.full((bp_i,), jnp.inf, jnp.float32).at[:b].set(t).reshape(bp_i, 1)
    t_row = jnp.full((bp_j,), -jnp.inf, jnp.float32).at[:b].set(t).reshape(1, bp_j)

    kernel = functools.partial(_soft_rank_loss_kernel, alpha=float(alpha))

    partials = pl.pallas_call(
        kernel,
        out_shape=jax.ShapeDtypeStruct((ni, 1, tile_j), jnp.float32),
        grid=(ni, nj),
        in_specs=[
            pl.BlockSpec((tile_i, 1), lambda i, j: (i, 0)),   # p_col
            pl.BlockSpec((1, tile_j), lambda i, j: (0, j)),   # p_row
            pl.BlockSpec((tile_i, 1), lambda i, j: (i, 0)),   # t_col
            pl.BlockSpec((1, tile_j), lambda i, j: (0, j)),   # t_row
        ],
        out_specs=pl.BlockSpec((1, 1, tile_j), lambda i, j: (i, 0, 0)),
        compiler_params=pltpu.CompilerParams(
            dimension_semantics=("parallel", "arbitrary"),
            vmem_limit_bytes=32 * 1024 * 1024,
        ),
        cost_estimate=pl.CostEstimate(
            flops=8 * bp_i * bp_j,
            transcendentals=2 * bp_i * bp_j,
            bytes_accessed=4 * (2 * bp_i * nj + 2 * bp_j * ni) + 4 * ni * tile_j,
        ),
    )(p_col, p_row, t_col, t_row)

    # Single tiny cross-lane reduction + normalization in the wrapper.
    total = jnp.sum(partials)
    return total / jnp.float32(num_not_mask_count)


def soft_rank_loss_ref(predict_scores, true_scores, alpha):
    """Pure-JAX reference mirroring the PyTorch forward exactly."""
    b = predict_scores.shape[0]
    p = predict_scores.astype(jnp.float32) * alpha
    scores_diff = -(p[None, :] - p[:, None])                 # [i,j] = p[i]-p[j]
    smaller_mask = true_scores[None, :] <= true_scores[:, None]
    num_not_mask_count = b ** 2 / 2 - b
    scores_diff = jnp.where(smaller_mask, -1.0e12, scores_diff).reshape(-1)
    return -jnp.log(jax.nn.sigmoid(-scores_diff)).sum() / num_not_mask_count


if __name__ == "__main__":
    alpha = 20.0

    # Unused `bias` buffer from the module's __init__ (kept for parity).
    bias = jnp.array([0.0], dtype=jnp.float32)
    del bias

    key = jax.random.PRNGKey(0)
    k1, k2 = jax.random.split(key)
    batch = 8
    predict_scores = jax.random.normal(k1, (batch,), dtype=jnp.float32)
    true_scores = jax.random.uniform(k2, (batch,), dtype=jnp.float32)

    loss = soft_rank_loss(predict_scores, true_scores, alpha)
    loss = jax.block_until_ready(loss)

    ref = jax.block_until_ready(soft_rank_loss_ref(predict_scores, true_scores, alpha))
    assert jnp.allclose(loss, ref, rtol=1e-5, atol=1e-5), (loss, ref)

    print("KERNEL_OK")
</pallas_src>

<mosaic_0001>
module attributes {stable_mosaic.version = 11 : i64} {
  func.func @_soft_rank_loss_kernel(%arg0: i32, %arg1: i32, %arg2: memref<8x1xf32, #tpu.memory_space<vmem>>, %arg3: memref<1x128xf32, #tpu.memory_space<vmem>>, %arg4: memref<8x1xf32, #tpu.memory_space<vmem>>, %arg5: memref<1x128xf32, #tpu.memory_space<vmem>>, %arg6: memref<1x1x128xf32, #tpu.memory_space<vmem>>) attributes {dimension_semantics = [#tpu.dimension_semantics<parallel>, #tpu.dimension_semantics<arbitrary>], iteration_bounds = array<i64: 1, 1>, scalar_prefetch = 0 : i64, scratch_operands = 0 : i64, tpu.core_type = #tpu.core_type<tc>, window_params = [{transform_indices = @transform_0, window_bounds = array<i64: 8, 1>}, {transform_indices = @transform_1, window_bounds = array<i64: 1, 128>}, {transform_indices = @transform_2, window_bounds = array<i64: 8, 1>}, {transform_indices = @transform_3, window_bounds = array<i64: 1, 128>}, {transform_indices = @transform_4, window_bounds = array<i64: 1, 1, 128>}]} {
    %c0_i32 = arith.constant 0 : i32
    %0 = arith.cmpi eq, %arg1, %c0_i32 : i32
    %1 = arith.extui %0 : i1 to i32
    %c0_i32_0 = arith.constant 0 : i32
    %2 = arith.cmpi ne, %1, %c0_i32_0 : i32
    scf.if %2 {
      %cst_20 = arith.constant 0.000000e+00 : f32
      %35 = vector.broadcast %cst_20 : f32 to vector<1x1x128xf32>
      %c0_21 = arith.constant 0 : index
      %c0_22 = arith.constant 0 : index
      %c0_23 = arith.constant 0 : index
      %36 = vector.load %arg6[%c0_21, %c0_22, %c0_23] : memref<1x1x128xf32, #tpu.memory_space<vmem>>, vector<1x1x128xf32>
      tpu.vector_store %arg6[%c0_21, %c0_22, %c0_23], %35 {strides = array<i32>} : memref<1x1x128xf32, #tpu.memory_space<vmem>>, vector<1x1x128xf32>,
    } else {
    }
    %c0 = arith.constant 0 : index
    %c0_1 = arith.constant 0 : index
    %3 = vector.load %arg2[%c0, %c0_1] : memref<8x1xf32, #tpu.memory_space<vmem>>, vector<8x1xf32>
    %cst = arith.constant 2.000000e+01 : f32
    %4 = vector.broadcast %cst : f32 to vector<8x1xf32>
    %5 = arith.mulf %3, %4 : vector<8x1xf32>
    %c0_2 = arith.constant 0 : index
    %c0_3 = arith.constant 0 : index
    %6 = vector.load %arg3[%c0_2, %c0_3] : memref<1x128xf32, #tpu.memory_space<vmem>>, vector<1x128xf32>
    %cst_4 = arith.constant 2.000000e+01 : f32
    %7 = vector.broadcast %cst_4 : f32 to vector<1x128xf32>
    %8 = arith.mulf %6, %7 : vector<1x128xf32>
    %9 = vector.broadcast %5 : vector<8x1xf32> to vector<8x128xf32>
    %10 = vector.broadcast %8 : vector<1x128xf32> to vector<8x128xf32>
    %11 = arith.subf %9, %10 : vector<8x128xf32>
    %c0_5 = arith.constant 0 : index
    %c0_6 = arith.constant 0 : index
    %12 = vector.load %arg5[%c0_5, %c0_6] : memref<1x128xf32, #tpu.memory_space<vmem>>, vector<1x128xf32>
    %c0_7 = arith.constant 0 : index
    %c0_8 = arith.constant 0 : index
    %13 = vector.load %arg4[%c0_7, %c0_8] : memref<8x1xf32, #tpu.memory_space<vmem>>, vector<8x1xf32>
    %14 = vector.broadcast %12 : vector<1x128xf32> to vector<8x128xf32>
    %15 = vector.broadcast %13 : vector<8x1xf32> to vector<8x128xf32>
    %16 = arith.cmpf ole, %14, %15 : vector<8x128xf32>
    %cst_9 = arith.constant 0.000000e+00 : f32
    %17 = vector.broadcast %cst_9 : f32 to vector<8x128xf32>
    %18 = arith.maximumf %11, %17 : vector<8x128xf32>
    %19 = math.absf %11 : vector<8x128xf32>
    %cst_10 = arith.constant 0.000000e+00 : f32
    %20 = vector.broadcast %cst_10 : f32 to vector<8x128xf32>
    %21 = arith.subf %20, %19 : vector<8x128xf32>
    %22 = math.exp %21 : vector<8x128xf32>
    %cst_11 = arith.constant 1.000000e+00 : f32
    %23 = vector.broadcast %cst_11 : f32 to vector<8x128xf32>
    %24 = arith.addf %23, %22 : vector<8x128xf32>
    %25 = math.log %24 : vector<8x128xf32>
    %26 = arith.addf %18, %25 : vector<8x128xf32>
    %cst_12 = arith.constant 0.000000e+00 : f32
    %27 = vector.broadcast %cst_12 : f32 to vector<8x128xf32>
    %28 = arith.select %16, %27, %26 : vector<8x128xi1>, vector<8x128xf32>
    %c0_13 = arith.constant 0 : index
    %c0_14 = arith.constant 0 : index
    %c0_15 = arith.constant 0 : index
    %29 = vector.load %arg6[%c0_13, %c0_14, %c0_15] : memref<1x1x128xf32, #tpu.memory_space<vmem>>, vector<1x1x128xf32>
    %cst_16 = arith.constant dense<0.000000e+00> : vector<128xf32>
    %30 = vector.multi_reduction <add>, %28, %cst_16 [0] : vector<8x128xf32> to vector<128xf32>
    %31 = vector.shape_cast %30 : vector<128xf32> to vector<1x128xf32>
    %32 = vector.shape_cast %31 : vector<1x128xf32> to vector<1x1x128xf32>
    %33 = arith.addf %29, %32 : vector<1x1x128xf32>
    %c0_17 = arith.constant 0 : index
    %c0_18 = arith.constant 0 : index
    %c0_19 = arith.constant 0 : index
    %34 = vector.load %arg6[%c0_17, %c0_18, %c0_19] : memref<1x1x128xf32, #tpu.memory_space<vmem>>, vector<1x1x128xf32>
    tpu.vector_store %arg6[%c0_17, %c0_18, %c0_19], %33 {strides = array<i32>} : memref<1x1x128xf32, #tpu.memory_space<vmem>>, vector<1x1x128xf32>,
    return
  }
  func.func @transform_0(%arg0: i32, %arg1: i32) -> (i32, i32) {
    %c0_i32 = arith.constant 0 : i32
    %c0_i32_0 = arith.constant 0 : i32
    return %arg0, %c0_i32 : i32, i32
  }
  func.func @transform_1(%arg0: i32, %arg1: i32) -> (i32, i32) {
    %c0_i32 = arith.constant 0 : i32
    %c0_i32_0 = arith.constant 0 : i32
    return %c0_i32, %arg1 : i32, i32
  }
  func.func @transform_2(%arg0: i32, %arg1: i32) -> (i32, i32) {
    %c0_i32 = arith.constant 0 : i32
    %c0_i32_0 = arith.constant 0 : i32
    return %arg0, %c0_i32 : i32, i32
  }
  func.func @transform_3(%arg0: i32, %arg1: i32) -> (i32, i32) {
    %c0_i32 = arith.constant 0 : i32
    %c0_i32_0 = arith.constant 0 : i32
    return %c0_i32, %arg1 : i32, i32
  }
  func.func @transform_4(%arg0: i32, %arg1: i32) -> (i32, i32, i32) {
    %c0_i32 = arith.constant 0 : i32
    %c0_i32_0 = arith.constant 0 : i32
    %c0_i32_1 = arith.constant 0 : i32
    return %arg0, %c0_i32, %c0_i32_0 : i32, i32, i32
  }
}

</mosaic_0001>

<llo_original>
// kernel: tpu_custom_call.1
$region0: #{tpu_custom_call.1}
  #allocation0 [shape = 'u32[]', space=smem, size = 0x4, offset = 0x4, fixed_abs, tag = 'smem constant byte address 0x4 - core index']
  #allocation1 [shape = 'u32[144,128]{1,0:T(1,128)}', space=vmem, size = 0x12000, scoped, tag = 'internal scratch']
  %s0 = inlined_call_operand.vmem [shape: f32[8,1], index: 0, kind: input, shape index: {}]
  %s1 = inlined_call_operand.vmem [shape: f32[1,128], index: 1, kind: input, shape index: {}]
  %s2 = inlined_call_operand.vmem [shape: f32[8,1], index: 2, kind: input, shape index: {}]
  %s3 = inlined_call_operand.vmem [shape: f32[1,128], index: 3, kind: input, shape index: {}]
  %s4 = inlined_call_operand.hbm [shape: f32[1,1,128], index: 4, kind: output, shape index: {}]
  %s5 = sld [smem:[#allocation0]]
  $region30: #{tpu_custom_call.1} parent=0
    _
  %s7 = ssub.s32 1, %s5
  %s8 = scalar_select 0, %s7, %s5
  $region1: #{tpu_custom_call.1} parent=0
    #allocation2 [shape = 'u8[512]{0}', space=vmem, size = 0x400, scoped, tag = 'output window, operand 0, single buffered']
    #allocation3 [shape = 's32[1]{0}', space=sflag, size = 0x4, scoped, tag = 'scoped memory for tpu_custom_call.1']
    %9 = vsyncpa [#allocation3], 0
    // Predicated region
    $region2: #{tpu_custom_call.1} parent=1 // pred_check
      _
    $region3: #{tpu_custom_call.1} parent=1 // pred_check_branch
      %11 = sbr.rel (0) target = $region5
    $region4: #{tpu_custom_call.1} parent=1 // pred_region
      _
    $region5: #{tpu_custom_call.1} parent=1 // pred_fallthru
      _
    // Predicated region
    $region6: #{tpu_custom_call.1} parent=1 // pred_check
      _
    $region7: #{tpu_custom_call.1} parent=1 // pred_check_branch
      %13 = sbr.rel (0) target = $region9
    $region8: #{tpu_custom_call.1} parent=1 // pred_region
      _
    $region9: #{tpu_custom_call.1} parent=1 // pred_fallthru
      _
    // Predicated region
    $region10: #{tpu_custom_call.1} parent=1 // pred_check
      _
    $region11: #{tpu_custom_call.1} parent=1 // pred_check_branch
      %15 = sbr.rel (0) target = $region13
    $region12: #{tpu_custom_call.1} parent=1 // pred_region
      _
    $region13: #{tpu_custom_call.1} parent=1 // pred_fallthru
      _
    // Predicated region
    $region14: #{tpu_custom_call.1} parent=1 // pred_check
      _
    $region15: #{tpu_custom_call.1} parent=1 // pred_check_branch
      %17 = sbr.rel (0) target = $region17
    $region16: #{tpu_custom_call.1} parent=1 // pred_region
      _
    $region17: #{tpu_custom_call.1} parent=1 // pred_fallthru
      _
    %p18 = scmp.eq.s32.totalorder 0, 0
    // Predicated region
    $region18: #{tpu_custom_call.1} parent=1 // pred_check
      %p19 = pneg %p18
    $region19: #{tpu_custom_call.1} parent=1 // pred_check_branch
      %21 = sbr.rel (%p19) target = $region21
    $region20: #{tpu_custom_call.1} parent=1 // pred_region
      %22 = vst [vmem:[#allocation2] sm:$0x1] 0.0
    $region21: #{tpu_custom_call.1} parent=1 // pred_fallthru
      _
    %v23 = vld [vmem:[%s0] sm:$0xff]
    %v24 = vmul.f32 %v23, 20.0
    %v25 = vld [vmem:[%s1] sm:$0x1]
    %v26 = vmul.f32 %v25, 20.0
    %28 = vset.pattern.permute.xlu0 0
    %29 = vperm.xlu0 %28, %v24
    %v30 = vpop.permute.xlu0 %29
    %v33 = vlaneseq
    %v34 = vshrl.u32 %v33, 7
    %v35 = vsub.s32 0, %v34
    %v36 = vrot.slane %v26, %v35
    %v38 = vsub.f32 %v30, %v36
    %v39 = vld [vmem:[%s3] sm:$0x1]
    %v40 = vld [vmem:[%s2] sm:$0xff]
    %v42 = vlaneseq
    %v43 = vshrl.u32 %v42, 7
    %v44 = vsub.s32 0, %v43
    %v45 = vrot.slane %v39, %v44
    %48 = vset.pattern.permute.xlu0 0
    %49 = vperm.xlu0 %48, %v40
    %v50 = vpop.permute.xlu0 %49
    %vm52 = vcmp.le.f32.partialorder %v45, %v50
    %v53 = vmax.f32 %v38, 0.0
    %v54 = vand.u32 2147483647, %v38
    %v55 = vsub.f32 0.0, %v54
    %v56 = vmul.f32 %v55, 1.442695
    %v57 = vpow.pop %v56
    %v58 = vadd.f32 %v57, 1.0
    %v59 = vlog2.pop %v58
    %v60 = vmul.f32 %v59, 0.6931472
    %v61 = vadd.f32 %v53, %v60
    %v62 = vsel %vm52, 0.0, %v61
    %v63 = vld [vmem:[#allocation2] sm:$0x1]
    %v64 = vrot.slane %v62, 4
    %v65 = vadd.f32 %v62, %v64
    %v66 = vrot.slane %v65, 2
    %v67 = vadd.f32 %v65, %v66
    %v68 = vrot.slane %v67, 1
    %v69 = vadd.f32 %v67, %v68
    %v70 = vadd.f32 %v63, %v69
    %71 = vst [vmem:[#allocation2] sm:$0x1] %v70
    // Predicated region
    $region22: #{tpu_custom_call.1} parent=1 // pred_check
      _
    $region23: #{tpu_custom_call.1} parent=1 // pred_check_branch
      %73 = sbr.rel (0) target = $region25
    $region24: #{tpu_custom_call.1} parent=1 // pred_region
      %s75 = ssub.s32 16, 16
      %76 = vsyncadd [#allocation3], %s75
      %s78 = sshll.u32 [#allocation2], 4
      %s79 = int_to_ptr.vmem [resolvable:$true] %s78
      %81 = dma.vmem_to_hbm [thread:$0]  %s79, 16, %s4, [#allocation3]
    $region25: #{tpu_custom_call.1} parent=1 // pred_fallthru
      _
    // Predicated region
    $region26: #{tpu_custom_call.1} parent=1 // pred_check
      _
    $region27: #{tpu_custom_call.1} parent=1 // pred_check_branch
      %83 = sbr.rel (0) target = $region29
    $region28: #{tpu_custom_call.1} parent=1 // pred_region
      %84 = dma.done [#allocation3], 16
    $region29: #{tpu_custom_call.1} parent=1 // pred_fallthru
      _
    %85 = vsyncpa [#allocation3], 1

</llo_original>
